<compile_context>
chip_gen: v5e
topology: v5e:2x2
jax: 0.10.0
libtpu: 0.0.40
codegen_flags: <defaults>
</compile_context>

<pallas_src>
import functools

import jax
import jax.numpy as jnp
import numpy as np
from jax.experimental import pallas as pl
from jax.experimental.pallas import tpu as pltpu


# ---------------------------------------------------------------------------
# Kernel
# ---------------------------------------------------------------------------
def _supernet_kernel(x_ref, wr_ref, br_ref, wall_ref, ball_ref, out_ref,
                     acc_ref, *, inv_seq_len):
    """One (batch-tile, output-column-tile) program.

    The trailing 'arbitrary' grid axis walks the sequence in tiles and
    accumulates the hidden-state sum in a small f32 VMEM scratch; the fused
    (Hpad, tO) matmul + bias run exactly once per (batch-tile, column-tile).
    """
    k = pl.program_id(2)

    @pl.when(k == 0)
    def _():
        acc_ref[...] = jnp.zeros_like(acc_ref)

    bt, ts, d = x_ref.shape
    # Fold (batch, seq) onto the sublane axis: one MXU pass for ray_mlp,
    # ReLU on the VPU, everything lane-dense because H is padded to 128.
    x2 = x_ref[...].reshape(bt * ts, d)                           # (bt*ts, D)
    h = jnp.maximum(
        jnp.dot(x2, wr_ref[...], preferred_element_type=jnp.float32)
        + br_ref[...], 0.0)                                       # (bt*ts, Hpad) f32
    acc_ref[...] += jnp.sum(h.reshape(bt, ts, -1), axis=1)        # running sum over S

    @pl.when(k == pl.num_programs(2) - 1)
    def _():
        # mean over S commutes with the affine map -> scale the tiny (bt, Hpad)
        # accumulator once, then one lane-dense matmul covering this column
        # tile of ALL prefix-token linears; bias added exactly once.
        hbar = (acc_ref[...] * inv_seq_len).astype(wall_ref.dtype)
        out_ref[...] = (
            jnp.dot(hbar, wall_ref[...], preferred_element_type=jnp.float32)
            + ball_ref[...]).astype(out_ref.dtype)                # (bt, tO)


# ---------------------------------------------------------------------------
# One-time parameter fusion (hoisted out of the per-call path)
# ---------------------------------------------------------------------------
def prepare_supernet_params(w_ray, b_ray, w_tokens, b_tokens,
                            compute_dtype=jnp.float32):
    """Fuse / pad the SuperNet parameters once at init.

    w_ray:    (D, H)    pre-transposed ray_mlp Linear weight
    b_ray:    (H,)      ray_mlp bias
    w_tokens: (P, H, D) pre-transposed per-prefix-token Linear weights
    b_tokens: (P, D)    per-prefix-token biases
    """
    D, H = w_ray.shape
    P, Hw, Dt = w_tokens.shape
    assert Hw == H and Dt == D
    Hpad = max(128, -(-H // 128) * 128)         # lane-dense hidden dim
    O = P * D

    w_ray_p = jnp.zeros((D, Hpad), compute_dtype).at[:, :H].set(
        w_ray.astype(compute_dtype))
    b_ray_p = jnp.zeros((1, Hpad), jnp.float32).at[0, :H].set(
        b_ray.astype(jnp.float32))
    # All P per-token linears folded into one lane-dense (Hpad, P*D) operand.
    w_all = jnp.zeros((Hpad, O), compute_dtype).at[:H, :].set(
        jnp.transpose(w_tokens, (1, 0, 2)).reshape(H, O).astype(compute_dtype))
    b_all = b_tokens.reshape(1, O).astype(jnp.float32)

    return dict(w_ray=w_ray_p, b_ray=b_ray_p, w_all=w_all, b_all=b_all,
                prefix_len=P, token_dim=D)


# ---------------------------------------------------------------------------
# Tile selection (VMEM-aware, lane-dense, v7x-friendly)
# ---------------------------------------------------------------------------
_VMEM_SOFT_BUDGET = 24 * 1024 * 1024   # fits the scoped default on v5e/v6e/v7x


def _col_tiles(O):
    tiles = [O]
    if O % 128 == 0:
        tiles += [t for t in range(O - 128, 127, -128) if O % t == 0]
    return tiles


def _pick_tiles(B, S, D, Hpad, O, in_itemsize, budget):
    out_itemsize = 4

    def step_bytes(bt, ts, to):
        return (2 * bt * ts * D * in_itemsize              # x tile (double-buffered)
                + 2 * bt * to * out_itemsize               # out tile (double-buffered)
                + bt * Hpad * 4                            # f32 accumulator scratch
                + 2 * (D * Hpad + Hpad * to) * in_itemsize # weight slabs (2 bufs)
                + 2 * (Hpad + to) * 4)                     # biases

    bt_cands = [c for c in (512, 256, 128, 64, 32, 16, 8) if c <= B] or [B]
    ts_cands = [t for t in range(S, 0, -1) if S % t == 0 and (t % 8 == 0 or t == S)]
    to_cands = _col_tiles(O)

    pick = None
    for bt in bt_cands:                 # prefer the biggest tiles that fit
        for ts in ts_cands:
            for to in to_cands:
                if step_bytes(bt, ts, to) <= budget:
                    pick = (bt, ts, to)
                    break
            if pick:
                break
        if pick:
            break
    if pick is None:                    # smallest plan even if over the soft budget
        pick = (bt_cands[-1], ts_cands[-1], to_cands[-1])
    bt, ts, to = pick

    # v7x has two TensorCores: make sure the 'parallel' axes expose >= 2 steps.
    nb = -(-B // bt)
    if nb * (O // to) < 2:
        for t in to_cands:
            if t <= O // 2:
                to = t
                break
    return bt, ts, to, step_bytes(bt, ts, to)


# ---------------------------------------------------------------------------
# Forward wrapper
# ---------------------------------------------------------------------------
def supernet_forward(inputs_embeds, params):
    """inputs_embeds: (B, S, D); params from prepare_supernet_params().
    Returns token_weights: (B, P, D) f32."""
    w_ray, b_ray = params["w_ray"], params["b_ray"]
    w_all, b_all = params["w_all"], params["b_all"]
    P, D = params["prefix_len"], params["token_dim"]
    compute_dtype = w_ray.dtype

    B, S, Din = inputs_embeds.shape
    assert Din == D
    Hpad = w_ray.shape[1]
    O = w_all.shape[1]
    in_itemsize = jnp.dtype(compute_dtype).itemsize

    bt, ts, to, need = _pick_tiles(B, S, D, Hpad, O, in_itemsize,
                                   _VMEM_SOFT_BUDGET)
    nb = -(-B // bt)
    B_pad = nb * bt
    nc = O // to
    ns = S // ts

    x = inputs_embeds.astype(compute_dtype)
    if B_pad != B:
        x = jnp.pad(x, ((0, B_pad - B), (0, 0), (0, 0)))

    kernel = functools.partial(_supernet_kernel, inv_seq_len=1.0 / S)

    flops = 2 * B_pad * S * D * Hpad * nc + 2 * B_pad * Hpad * O
    bytes_accessed = (B_pad * S * D * in_itemsize * nc
                      + (D * Hpad + Hpad * O) * in_itemsize
                      + (Hpad + O) * 4
                      + B_pad * O * 4)
    vmem_limit = int(max(16 << 20, min(need * 3 // 2 + (1 << 20), 48 << 20)))

    out = pl.pallas_call(
        kernel,
        out_shape=jax.ShapeDtypeStruct((B_pad, O), jnp.float32),
        grid_spec=pltpu.PrefetchScalarGridSpec(
            num_scalar_prefetch=0,
            grid=(nb, nc, ns),
            in_specs=[
                pl.BlockSpec((bt, ts, D), lambda i, j, k: (i, k, 0)),  # x tile
                pl.BlockSpec((D, Hpad), lambda i, j, k: (0, 0)),       # ray_mlp W
                pl.BlockSpec((1, Hpad), lambda i, j, k: (0, 0)),       # ray_mlp b
                pl.BlockSpec((Hpad, to), lambda i, j, k: (0, j)),      # fused token Ws
                pl.BlockSpec((1, to), lambda i, j, k: (0, j)),         # fused token bs
            ],
            out_specs=pl.BlockSpec((bt, to), lambda i, j, k: (i, j)),
            scratch_shapes=[pltpu.VMEM((bt, Hpad), jnp.float32)],
        ),
        compiler_params=pltpu.CompilerParams(
            dimension_semantics=("parallel", "parallel", "arbitrary"),
            vmem_limit_bytes=vmem_limit),
        cost_estimate=pl.CostEstimate(flops=flops, transcendentals=0,
                                      bytes_accessed=bytes_accessed),
    )(x, w_ray, b_ray, w_all, b_all)

    return out[:B].reshape(B, P, D)


# ---------------------------------------------------------------------------
# Pure-JAX reference (literal translation of SuperNet.forward)
# ---------------------------------------------------------------------------
def reference_forward(x, w_ray, b_ray, w_tokens, b_tokens):
    h = jax.nn.relu(jnp.einsum('bsd,dh->bsh', x, w_ray) + b_ray)            # (B,S,H)
    y = jnp.einsum('bsh,phd->bpsd', h, w_tokens) + b_tokens[None, :, None, :]
    return y.mean(axis=2)                                                   # (B,P,D)


# TODO(synk): the debug `print('token_weights.shape', ...)` in the PyTorch
# forward is host-side logging with no kernel equivalent and is dropped.

if __name__ == "__main__":
    # Small shapes consistent with the module:
    #   batch=2, seq=8, token_dim=128, scale=16 (hidden=8), prefix_len=4.
    B, S, D = 2, 8, 128
    scale = 16
    H = D // scale            # 8
    P = 4                     # prefix_len

    key = jax.random.PRNGKey(0)
    kx, kw1, kb1, kw2, kb2 = jax.random.split(key, 5)

    x = jax.random.normal(kx, (B, S, D), dtype=jnp.float32)
    w_ray = jax.random.normal(kw1, (D, H), dtype=jnp.float32) / np.sqrt(D)
    b_ray = jax.random.normal(kb1, (H,), dtype=jnp.float32) * 0.01
    w_tokens = jax.random.normal(kw2, (P, H, D), dtype=jnp.float32) / np.sqrt(H)
    b_tokens = jax.random.normal(kb2, (P, D), dtype=jnp.float32) * 0.01

    ref = reference_forward(x, w_ray, b_ray, w_tokens, b_tokens)

    # Exact f32 path (params fused once, outside the forward).
    params_f32 = prepare_supernet_params(w_ray, b_ray, w_tokens, b_tokens,
                                         compute_dtype=jnp.float32)
    out_f32 = jax.block_until_ready(supernet_forward(x, params_f32))
    assert out_f32.shape == (B, P, D)
    np.testing.assert_allclose(np.asarray(out_f32), np.asarray(ref),
                               rtol=1e-5, atol=1e-5)

    # bf16-operand / f32-accumulate fast path (halves DMA bytes, native MXU
    # fast path); tolerance loosened accordingly.
    params_bf16 = prepare_supernet_params(w_ray, b_ray, w_tokens, b_tokens,
                                          compute_dtype=jnp.bfloat16)
    out_bf16 = jax.block_until_ready(supernet_forward(x, params_bf16))
    np.testing.assert_allclose(np.asarray(out_bf16), np.asarray(ref),
                               rtol=5e-2, atol=5e-2)

    print("KERNEL_OK")
</pallas_src>

<mosaic_0001>
module attributes {stable_mosaic.version = 11 : i64} {
  func.func @_supernet_kernel(%arg0: i32, %arg1: i32, %arg2: i32, %arg3: memref<2x8x128xf32, #tpu.memory_space<vmem>>, %arg4: memref<128x128xf32, #tpu.memory_space<vmem>>, %arg5: memref<1x128xf32, #tpu.memory_space<vmem>>, %arg6: memref<128x256xf32, #tpu.memory_space<vmem>>, %arg7: memref<1x256xf32, #tpu.memory_space<vmem>>, %arg8: memref<2x256xf32, #tpu.memory_space<vmem>>, %arg9: memref<2x128xf32, #tpu.memory_space<vmem>>) attributes {dimension_semantics = [#tpu.dimension_semantics<parallel>, #tpu.dimension_semantics<parallel>, #tpu.dimension_semantics<arbitrary>], iteration_bounds = array<i64: 1, 2, 1>, scalar_prefetch = 0 : i64, scratch_operands = 1 : i64, tpu.core_type = #tpu.core_type<tc>, window_params = [{transform_indices = @transform_0, window_bounds = array<i64: 2, 8, 128>}, {pipeline_mode = #tpu.pipeline_mode<synchronous>, transform_indices = @transform_1, window_bounds = array<i64: 128, 128>}, {pipeline_mode = #tpu.pipeline_mode<synchronous>, transform_indices = @transform_2, window_bounds = array<i64: 1, 128>}, {transform_indices = @transform_3, window_bounds = array<i64: 128, 256>}, {transform_indices = @transform_4, window_bounds = array<i64: 1, 256>}, {transform_indices = @transform_5, window_bounds = array<i64: 2, 256>}]} {
    %c0_i32 = arith.constant 0 : i32
    %0 = arith.cmpi eq, %arg2, %c0_i32 : i32
    %1 = arith.extui %0 : i1 to i32
    %c0_i32_0 = arith.constant 0 : i32
    %2 = arith.cmpi ne, %1, %c0_i32_0 : i32
    scf.if %2 {
      %cst_15 = arith.constant 0.000000e+00 : f32
      %20 = vector.broadcast %cst_15 : f32 to vector<2x128xf32>
      %c0_16 = arith.constant 0 : index
      %c0_17 = arith.constant 0 : index
      %21 = vector.load %arg9[%c0_16, %c0_17] : memref<2x128xf32, #tpu.memory_space<vmem>>, vector<2x128xf32>
      tpu.vector_store %arg9[%c0_16, %c0_17], %20 {strides = array<i32>} : memref<2x128xf32, #tpu.memory_space<vmem>>, vector<2x128xf32>,
    } else {
    }
    %c0 = arith.constant 0 : index
    %c0_1 = arith.constant 0 : index
    %c0_2 = arith.constant 0 : index
    %3 = vector.load %arg3[%c0, %c0_1, %c0_2] : memref<2x8x128xf32, #tpu.memory_space<vmem>>, vector<2x8x128xf32>
    %4 = vector.shape_cast %3 : vector<2x8x128xf32> to vector<16x128xf32>
    %c0_3 = arith.constant 0 : index
    %c0_4 = arith.constant 0 : index
    %5 = vector.load %arg4[%c0_3, %c0_4] : memref<128x128xf32, #tpu.memory_space<vmem>>, vector<128x128xf32>
    %cst = arith.constant dense<0.000000e+00> : vector<16x128xf32>
    %6 = tpu.matmul %4, %5, %cst {dimension_numbers = #tpu.dot_dimension_numbers<[1], [0], [0], [1], [0, 0, 1, 1], [], []>} : vector<16x128xf32>, vector<128x128xf32>, vector<16x128xf32> -> vector<16x128xf32>
    %c0_5 = arith.constant 0 : index
    %c0_6 = arith.constant 0 : index
    %7 = vector.load %arg5[%c0_5, %c0_6] : memref<1x128xf32, #tpu.memory_space<vmem>>, vector<1x128xf32>
    %8 = vector.broadcast %7 : vector<1x128xf32> to vector<16x128xf32>
    %9 = arith.addf %6, %8 : vector<16x128xf32>
    %cst_7 = arith.constant 0.000000e+00 : f32
    %10 = vector.broadcast %cst_7 : f32 to vector<16x128xf32>
    %11 = arith.maximumf %9, %10 : vector<16x128xf32>
    %c0_8 = arith.constant 0 : index
    %c0_9 = arith.constant 0 : index
    %12 = vector.load %arg9[%c0_8, %c0_9] : memref<2x128xf32, #tpu.memory_space<vmem>>, vector<2x128xf32>
    %13 = vector.shape_cast %11 : vector<16x128xf32> to vector<2x8x128xf32>
    %cst_10 = arith.constant dense<0.000000e+00> : vector<2x128xf32>
    %14 = vector.multi_reduction <add>, %13, %cst_10 [1] : vector<2x8x128xf32> to vector<2x128xf32>
    %15 = arith.addf %12, %14 : vector<2x128xf32>
    %c0_11 = arith.constant 0 : index
    %c0_12 = arith.constant 0 : index
    %16 = vector.load %arg9[%c0_11, %c0_12] : memref<2x128xf32, #tpu.memory_space<vmem>>, vector<2x128xf32>
    tpu.vector_store %arg9[%c0_11, %c0_12], %15 {strides = array<i32>} : memref<2x128xf32, #tpu.memory_space<vmem>>, vector<2x128xf32>,
    %c0_i32_13 = arith.constant 0 : i32
    %17 = arith.cmpi eq, %arg2, %c0_i32_13 : i32
    %18 = arith.extui %17 : i1 to i32
    %c0_i32_14 = arith.constant 0 : i32
    %19 = arith.cmpi ne, %18, %c0_i32_14 : i32
    scf.if %19 {
      %c0_15 = arith.constant 0 : index
      %c0_16 = arith.constant 0 : index
      %20 = vector.load %arg9[%c0_15, %c0_16] : memref<2x128xf32, #tpu.memory_space<vmem>>, vector<2x128xf32>
      %cst_17 = arith.constant 1.250000e-01 : f32
      %21 = vector.broadcast %cst_17 : f32 to vector<2x128xf32>
      %22 = arith.mulf %20, %21 : vector<2x128xf32>
      %c0_18 = arith.constant 0 : index
      %c0_19 = arith.constant 0 : index
      %23 = vector.load %arg6[%c0_18, %c0_19] : memref<128x256xf32, #tpu.memory_space<vmem>>, vector<128x256xf32>
      %cst_20 = arith.constant dense<0.000000e+00> : vector<2x256xf32>
      %24 = tpu.matmul %22, %23, %cst_20 {dimension_numbers = #tpu.dot_dimension_numbers<[1], [0], [0], [1], [0, 0, 1, 1], [], []>} : vector<2x128xf32>, vector<128x256xf32>, vector<2x256xf32> -> vector<2x256xf32>
      %c0_21 = arith.constant 0 : index
      %c0_22 = arith.constant 0 : index
      %25 = vector.load %arg7[%c0_21, %c0_22] : memref<1x256xf32, #tpu.memory_space<vmem>>, vector<1x256xf32>
      %26 = vector.broadcast %25 : vector<1x256xf32> to vector<2x256xf32>
      %27 = arith.addf %24, %26 : vector<2x256xf32>
      %c0_23 = arith.constant 0 : index
      %c0_24 = arith.constant 0 : index
      %28 = vector.load %arg8[%c0_23, %c0_24] : memref<2x256xf32, #tpu.memory_space<vmem>>, vector<2x256xf32>
      tpu.vector_store %arg8[%c0_23, %c0_24], %27 {strides = array<i32>} : memref<2x256xf32, #tpu.memory_space<vmem>>, vector<2x256xf32>,
    } else {
    }
    return
  }
  func.func @transform_0(%arg0: i32, %arg1: i32, %arg2: i32) -> (i32, i32, i32) {
    %c0_i32 = arith.constant 0 : i32
    %c0_i32_0 = arith.constant 0 : i32
    return %arg0, %arg2, %c0_i32 : i32, i32, i32
  }
  func.func @transform_1(%arg0: i32, %arg1: i32, %arg2: i32) -> (i32, i32) {
    %c0_i32 = arith.constant 0 : i32
    %c0_i32_0 = arith.constant 0 : i32
    %c0_i32_1 = arith.constant 0 : i32
    return %c0_i32, %c0_i32_0 : i32, i32
  }
  func.func @transform_2(%arg0: i32, %arg1: i32, %arg2: i32) -> (i32, i32) {
    %c0_i32 = arith.constant 0 : i32
    %c0_i32_0 = arith.constant 0 : i32
    %c0_i32_1 = arith.constant 0 : i32
    return %c0_i32, %c0_i32_0 : i32, i32
  }
  func.func @transform_3(%arg0: i32, %arg1: i32, %arg2: i32) -> (i32, i32) {
    %c0_i32 = arith.constant 0 : i32
    %c0_i32_0 = arith.constant 0 : i32
    return %c0_i32, %arg1 : i32, i32
  }
  func.func @transform_4(%arg0: i32, %arg1: i32, %arg2: i32) -> (i32, i32) {
    %c0_i32 = arith.constant 0 : i32
    %c0_i32_0 = arith.constant 0 : i32
    return %c0_i32, %arg1 : i32, i32
  }
  func.func @transform_5(%arg0: i32, %arg1: i32, %arg2: i32) -> (i32, i32) {
    %c0_i32 = arith.constant 0 : i32
    return %arg0, %arg1 : i32, i32
  }
}

</mosaic_0001>

<llo_original>
// kernel: tpu_custom_call.1
$region0: #{tpu_custom_call.1}
  #allocation0 [shape = 'u32[]', space=smem, size = 0x4, offset = 0x4, fixed_abs, tag = 'smem constant byte address 0x4 - core index']
  #allocation1 [shape = 'u32[72,128]{1,0:T(1,128)}', space=vmem, size = 0x9000, scoped, tag = 'internal scratch']
  #allocation2 [shape = 'f32[2,128]{1,0:T(2,128)}', space=vmem, size = 0x400, scoped, tag = 'scratch operand']
  %s0 = inlined_call_operand.hbm [shape: f32[2,8,128], index: 0, kind: input, shape index: {}]
  %s1 = inlined_call_operand.hbm [shape: f32[128,128], index: 1, kind: input, shape index: {}]
  %s2 = inlined_call_operand.vmem [shape: f32[1,128], index: 2, kind: input, shape index: {}]
  %s3 = inlined_call_operand.hbm [shape: f32[128,512], index: 3, kind: input, shape index: {}]
  %s4 = inlined_call_operand.hbm [shape: f32[1,512], index: 4, kind: input, shape index: {}]
  %s5 = inlined_call_operand.hbm [shape: f32[2,512], index: 5, kind: output, shape index: {}]
  %s6 = sld [smem:[#allocation0]]
  $region77: #{tpu_custom_call.1} parent=0
    _
  %s8 = ssub.s32 1, %s6
  %s9 = scalar_select 0, %s8, %s6
  $region1: #{tpu_custom_call.1} parent=0
    #allocation3 [shape = 'u8[8192]{0}', space=vmem, size = 0x2000, scoped, tag = 'input window, operand 0, single buffered']
    #allocation4 [shape = 's32[2]{0}', space=sflag, size = 0x8, scoped, tag = 'scoped memory for tpu_custom_call.1']
    #allocation5 [shape = 's32[2]{0}', space=sflag, size = 0x8, scoped, tag = 'scoped memory for tpu_custom_call.1']
    #allocation6 [shape = 'u8[65536]{0}', space=vmem, size = 0x10000, scoped, tag = 'input window, operand 1, single buffered']
    #allocation7 [shape = 's32[1]{0}', space=sflag, size = 0x4, scoped, tag = 'scoped memory for tpu_custom_call.1']
    #allocation8 [shape = 'u8[262144]{0}', space=vmem, size = 0x40000, scoped, tag = 'input window, operand 3']
    #allocation9 [shape = 'u8[2048]{0}', space=vmem, size = 0x800, scoped, tag = 'input window, operand 4']
    #allocation10 [shape = 'u8[4096]{0}', space=vmem, size = 0x1000, scoped, tag = 'output window, operand 0']
    %10 = vsyncpa [#allocation4], 0
    %11 = vsyncpa [#allocation7], 0
    %12 = vsyncpa [#allocation5], 0
    %s13 = scalar_lea.sflag [#allocation5], 1
    %14 = vsyncpa %s13, 0
    loop: start=0, step=1, limit=4
    $region2: #{tpu_custom_call.1} parent=1 // loop_pre_header
      _
    $region3: #{tpu_custom_call.1} parent=1 // loop_header
      %s16 = sphi 0, %s20
      %p17 = scmp.ge.s32.totalorder %s16, 4
      %s23 = sphi 0, %s42
      %s24 = sphi 0, %s38
      %s25 = sphi 0, %s34
      %s26 = sphi 0, %s23
      %s27 = sphi 0, %s24
      %s28 = sphi 0, %s25
      %s29 = sphi 0, %s26
      %s30 = sphi 0, %s27
      %s31 = sphi 0, %s28
      %s47 = sphi 0, %s49
      %s50 = sphi 0, %s47
      %s51 = sphi 0, %s50
      %s67 = sphi 0, %s51
      %s71 = sphi 0, %s71
      %s73 = sphi 0, %s71
      %s74 = sphi 0, %s73
      %s88 = sphi 0, %s74
      %s92 = sphi 0, %s92
      %s94 = sphi 0, %s92
      %s95 = sphi 0, %s94
      %s109 = sphi 0, %s95
      %s115 = sphi 0, %s117
      %s118 = sphi 0, %s115
      %s119 = sphi 0, %s118
      %s135 = sphi 0, %s119
      %s141 = sphi 0, %s143
      %s144 = sphi 0, %s141
      %s145 = sphi 0, %s144
      %s161 = sphi 0, %s145
      %s169 = sphi 0, %s171
      %s172 = sphi 0, %s169
      %s173 = sphi 0, %s172
      %s189 = sphi 0, %s173
    $region4: #{tpu_custom_call.1} parent=1 // loop_header_branch
      %19 = sbr.rel (%p17) target = $region8
    $region5: #{tpu_custom_call.1} parent=1 // loop_body
      %s21 = ssub.s32 %s16, 1
      %s22 = ssub.s32 %s16, 2
      %s32 = sadd.s32 1, %s25
      %p33 = scmp.ge.s32.totalorder %s32, 1
      %s34 = scalar_select %p33, 0, %s32
      %s35 = sadd.s32 1, %s24
      %s36 = scalar_select %p33, %s35, %s24
      %p37 = scmp.ge.s32.totalorder %s36, 2
      %s38 = scalar_select %p37, 0, %s36
      %s39 = sadd.s32 1, %s23
      %s40 = scalar_select %p37, %s39, %s23
      %p41 = scmp.ge.s32.totalorder %s40, 1
      %s42 = scalar_select %p41, 0, %s40
      %s43 = ssub.s32 %s23, %s42
      %s44 = ssub.s32 %s25, %s34
      %s45 = sor.u32 %s43, %s44
      %p46 = scmp.eq.s32.totalorder %s45, 0
      %s48 = sadd.s32 %s47, 1
      %s49 = scalar_select %p46, %s47, %s48
      %p52 = pneg %p46
      %p53 = scmp.eq.s32.totalorder %s16, 1
      %p54 = por %p52, %p53
      %p55 = scmp.ne.s32.totalorder %s47, %s50
      %p56 = scmp.eq.s32.totalorder %s16, 0
      %p57 = por %p55, %p56
      %p58 = scmp.ne.s32.totalorder %s47, %s50
      %p59 = scmp.eq.s32.totalorder %s21, 1
      %p60 = por %p58, %p59
      %p61 = scmp.ne.s32.totalorder %s50, %s51
      %p62 = scmp.eq.s32.totalorder %s21, 0
      %p63 = por %p61, %p62
      %p64 = scmp.ne.s32.totalorder %s50, %s51
      %p65 = scmp.eq.s32.totalorder %s22, 1
      %p66 = por %p64, %p65
      %p68 = scmp.ne.s32.totalorder %s51, %s67
      %p69 = scmp.eq.s32.totalorder %s22, 0
      %p70 = por %p68, %p69
      %s72 = sadd.s32 %s71, 1
      %p75 = scmp.eq.s32.totalorder %s16, 1
      %p76 = scmp.ne.s32.totalorder %s71, %s73
      %p77 = scmp.eq.s32.totalorder %s16, 0
      %p78 = por %p76, %p77
      %p79 = scmp.ne.s32.totalorder %s71, %s73
      %p80 = scmp.eq.s32.totalorder %s21, 1
      %p81 = por %p79, %p80
      %p82 = scmp.ne.s32.totalorder %s73, %s74
      %p83 = scmp.eq.s32.totalorder %s21, 0
      %p84 = por %p82, %p83
      %p85 = scmp.ne.s32.totalorder %s73, %s74
      %p86 = scmp.eq.s32.totalorder %s22, 1
      %p87 = por %p85, %p86
      %p89 = scmp.ne.s32.totalorder %s74, %s88
      %p90 = scmp.eq.s32.totalorder %s22, 0
      %p91 = por %p89, %p90
      %s93 = sadd.s32 %s92, 1
      %p96 = scmp.eq.s32.totalorder %s16, 1
      %p97 = scmp.ne.s32.totalorder %s92, %s94
      %p98 = scmp.eq.s32.totalorder %s16, 0
      %p99 = por %p97, %p98
      %p100 = scmp.ne.s32.totalorder %s92, %s94
      %p101 = scmp.eq.s32.totalorder %s21, 1
      %p102 = por %p100, %p101
      %p103 = scmp.ne.s32.totalorder %s94, %s95
      %p104 = scmp.eq.s32.totalorder %s21, 0
      %p105 = por %p103, %p104
      %p106 = scmp.ne.s32.totalorder %s94, %s95
      %p107 = scmp.eq.s32.totalorder %s22, 1
      %p108 = por %p106, %p107
      %p110 = scmp.ne.s32.totalorder %s95, %s109
      %p111 = scmp.eq.s32.totalorder %s22, 0
      %p112 = por %p110, %p111
      %s113 = ssub.s32 %s24, %s38
      %p114 = scmp.eq.s32.totalorder %s113, 0
      %s116 = sadd.s32 %s115, 1
      %s117 = scalar_select %p114, %s115, %s116
      %p120 = pneg %p114
      %p121 = scmp.eq.s32.totalorder %s16, 1
      %p122 = por %p120, %p121
      %p123 = scmp.ne.s32.totalorder %s115, %s118
      %p124 = scmp.eq.s32.totalorder %s16, 0
      %p125 = por %p123, %p124
      %p126 = scmp.ne.s32.totalorder %s115, %s118
      %p127 = scmp.eq.s32.totalorder %s21, 1
      %p128 = por %p126, %p127
      %p129 = scmp.ne.s32.totalorder %s118, %s119
      %p130 = scmp.eq.s32.totalorder %s21, 0
      %p131 = por %p129, %p130
      %p132 = scmp.ne.s32.totalorder %s118, %s119
      %p133 = scmp.eq.s32.totalorder %s22, 1
      %p134 = por %p132, %p133
      %p136 = scmp.ne.s32.totalorder %s119, %s135
      %p137 = scmp.eq.s32.totalorder %s22, 0
      %p138 = por %p136, %p137
      %s139 = ssub.s32 %s24, %s38
      %p140 = scmp.eq.s32.totalorder %s139, 0
      %s142 = sadd.s32 %s141, 1
      %s143 = scalar_select %p140, %s141, %s142
      %p146 = pneg %p140
      %p147 = scmp.eq.s32.totalorder %s16, 1
      %p148 = por %p146, %p147
      %p149 = scmp.ne.s32.totalorder %s141, %s144
      %p150 = scmp.eq.s32.totalorder %s16, 0
      %p151 = por %p149, %p150
      %p152 = scmp.ne.s32.totalorder %s141, %s144
      %p153 = scmp.eq.s32.totalorder %s21, 1
      %p154 = por %p152, %p153
      %p155 = scmp.ne.s32.totalorder %s144, %s145
      %p156 = scmp.eq.s32.totalorder %s21, 0
      %p157 = por %p155, %p156
      %p158 = scmp.ne.s32.totalorder %s144, %s145
      %p159 = scmp.eq.s32.totalorder %s22, 1
      %p160 = por %p158, %p159
      %p162 = scmp.ne.s32.totalorder %s145, %s161
      %p163 = scmp.eq.s32.totalorder %s22, 0
      %p164 = por %p162, %p163
      %s165 = ssub.s32 %s23, %s42
      %s166 = ssub.s32 %s24, %s38
      %s167 = sor.u32 %s165, %s166
      %p168 = scmp.eq.s32.totalorder %s167, 0
      %s170 = sadd.s32 %s169, 1
      %s171 = scalar_select %p168, %s169, %s170
      %p174 = pneg %p168
      %p175 = scmp.eq.s32.totalorder %s16, 1
      %p176 = por %p174, %p175
      %p177 = scmp.ne.s32.totalorder %s169, %s172
      %p178 = scmp.eq.s32.totalorder %s16, 0
      %p179 = por %p177, %p178
      %p180 = scmp.ne.s32.totalorder %s169, %s172
      %p181 = scmp.eq.s32.totalorder %s21, 1
      %p182 = por %p180, %p181
      %p183 = scmp.ne.s32.totalorder %s172, %s173
      %p184 = scmp.eq.s32.totalorder %s21, 0
      %p185 = por %p183, %p184
      %p186 = scmp.ne.s32.totalorder %s172, %s173
      %p187 = scmp.eq.s32.totalorder %s22, 1
      %p188 = por %p186, %p187
      %p190 = scmp.ne.s32.totalorder %s173, %s189
      %p191 = scmp.eq.s32.totalorder %s22, 0
      %p192 = por %p190, %p191
      %p193 = scmp.le.s32.totalorder 1, %s16
      %p194 = scmp.lt.s32.totalorder %s16, 3
      %p195 = pnand %p193, %p194
      %p196 = pneg %p195
      // Predicated region
      $region9: #{tpu_custom_call.1} parent=5 // pred_check
        _
      $region10: #{tpu_custom_call.1} parent=5 // pred_check_branch
        %198 = sbr.rel (%p195) target = $region12
      $region11: #{tpu_custom_call.1} parent=5 // pred_region
        %s199 = ssub.s32 %s16, 1
        // Predicated region
        $region13: #{tpu_custom_call.1} parent=11 // pred_check
          %p200 = pneg %p63
        $region14: #{tpu_custom_call.1} parent=11 // pred_check_branch
          %202 = sbr.rel (%p200) target = $region16
        $region15: #{tpu_custom_call.1} parent=11 // pred_region
          %s203 = smul.u32 2, %s26
          %205 = vsyncadd [#allocation4], 0
          %s206 = sadd.s32 %s28, %s203
          %s207 = smul.addr %s206, 8
          %s208 = scalar_lea.hbm %s0, %s207
          %s209 = sshll.u32 %s208, 4
          %s210 = int_to_ptr.hbm [resolvable:$true] %s209
          %s211 = sshll.u32 [#allocation3], 4
          %s212 = int_to_ptr.vmem [resolvable:$true] %s211
          %217 = dma.hbm_to_vmem [thread:$0]  %s210, 256, %s212, [#allocation4], 128, 128, 8
        $region16: #{tpu_custom_call.1} parent=11 // pred_fallthru
          _
        // Predicated region
        $region17: #{tpu_custom_call.1} parent=11 // pred_check
          %p218 = pneg %p84
        $region18: #{tpu_custom_call.1} parent=11 // pred_check_branch
          %220 = sbr.rel (%p218) target = $region20
        $region19: #{tpu_custom_call.1} parent=11 // pred_region
          %222 = vsyncadd [#allocation7], 0
          %s223 = sshll.u32 %s1, 4
          %s224 = int_to_ptr.hbm [resolvable:$true] %s223
          %s225 = sshll.u32 [#allocation6], 4
          %s226 = int_to_ptr.vmem [resolvable:$true] %s225
          %231 = dma.hbm_to_vmem [thread:$0]  %s224, 2048, %s226, [#allocation7], 128, 128, 8
        $region20: #{tpu_custom_call.1} parent=11 // pred_fallthru
          _
        // Predicated region
        $region21: #{tpu_custom_call.1} parent=11 // pred_check
          %p232 = pneg %p105
        $region22: #{tpu_custom_call.1} parent=11 // pred_check_branch
          %234 = sbr.rel (%p232) target = $region24
        $region23: #{tpu_custom_call.1} parent=11 // pred_region
          _
        $region24: #{tpu_custom_call.1} parent=11 // pred_fallthru
          _
      $region12: #{tpu_custom_call.1} parent=5 // pred_fallthru
        _
      %p235 = scmp.lt.s32.totalorder %s16, 2
      // Predicated region
      $region25: #{tpu_custom_call.1} parent=5 // pred_check
        %p236 = pneg %p235
      $region26: #{tpu_custom_call.1} parent=5 // pred_check_branch
        %238 = sbr.rel (%p236) target = $region28
      $region27: #{tpu_custom_call.1} parent=5 // pred_region
        // Predicated region
        $region29: #{tpu_custom_call.1} parent=27 // pred_check
          %p239 = pneg %p125
        $region30: #{tpu_custom_call.1} parent=27 // pred_check_branch
          %241 = sbr.rel (%p239) target = $region32
        $region31: #{tpu_custom_call.1} parent=27 // pred_region
          %s242 = sand.u32 %s16, 1
          %s243 = scalar_lea.sflag [#allocation4], %s242
          %s244 = sand.u32 %s115, 1
          %s245 = smul.addr %s244, 256
          %s246 = scalar_lea.vmem [#allocation8], %s245
          %s247 = smul.u32 2, %s24
          %249 = vsyncadd %s243, 0
          %s250 = smul.addr %s247, 8
          %s251 = scalar_lea.hbm %s3, %s250
          %s252 = sshll.u32 %s251, 4
          %s253 = int_to_ptr.hbm [resolvable:$true] %s252
          %s254 = sshll.u32 %s246, 4
          %s255 = int_to_ptr.vmem [resolvable:$true] %s254
          %260 = dma.hbm_to_vmem [thread:$0]  %s253, 4096, %s255, %s243, 512, 256, 16
        $region32: #{tpu_custom_call.1} parent=27 // pred_fallthru
          _
        // Predicated region
        $region33: #{tpu_custom_call.1} parent=27 // pred_check
          %p261 = pneg %p151
        $region34: #{tpu_custom_call.1} parent=27 // pred_check_branch
          %263 = sbr.rel (%p261) target = $region36
        $region35: #{tpu_custom_call.1} parent=27 // pred_region
          %s264 = sand.u32 %s16, 1
          %s265 = scalar_lea.sflag [#allocation4], %s264
          %s266 = sand.u32 %s141, 1
          %s267 = smul.addr %s266, 2
          %s268 = scalar_lea.vmem [#allocation9], %s267
          %s269 = smul.u32 2, %s24
          %271 = vsyncadd %s265, 0
          %s272 = scalar_lea.hbm %s4, %s269
          %s274 = sshll.u32 %s272, 4
          %s275 = int_to_ptr.hbm [resolvable:$true] %s274
          %s276 = sshll.u32 %s268, 4
          %s277 = int_to_ptr.vmem [resolvable:$true] %s276
          %279 = dma.hbm_to_vmem [thread:$0]  %s275, 32, %s277, %s265
        $region36: #{tpu_custom_call.1} parent=27 // pred_fallthru
          _
      $region28: #{tpu_custom_call.1} parent=5 // pred_fallthru
        _
      %p280 = scmp.le.s32.totalorder 1, %s16
      %p281 = scmp.lt.s32.totalorder %s16, 3
      %p282 = pnand %p280, %p281
      %p283 = pneg %p282
      // Predicated region
      $region37: #{tpu_custom_call.1} parent=5 // pred_check
        _
      $region38: #{tpu_custom_call.1} parent=5 // pred_check_branch
        %285 = sbr.rel (%p282) target = $region40
      $region39: #{tpu_custom_call.1} parent=5 // pred_region
        %s286 = ssub.s32 %s16, 1
        // Predicated region
        $region41: #{tpu_custom_call.1} parent=39 // pred_check
          %p287 = pneg %p63
        $region42: #{tpu_custom_call.1} parent=39 // pred_check_branch
          %289 = sbr.rel (%p287) target = $region44
        $region43: #{tpu_custom_call.1} parent=39 // pred_region
          %291 = dma.done [#allocation4], 256
        $region44: #{tpu_custom_call.1} parent=39 // pred_fallthru
          _
        // Predicated region
        $region45: #{tpu_custom_call.1} parent=39 // pred_check
          %p292 = pneg %p84
        $region46: #{tpu_custom_call.1} parent=39 // pred_check_branch
          %294 = sbr.rel (%p292) target = $region48
        $region47: #{tpu_custom_call.1} parent=39 // pred_region
          %296 = dma.done [#allocation7], 2048
        $region48: #{tpu_custom_call.1} parent=39 // pred_fallthru
          _
        %s297 = sand.u32 %s21, 1
        %s298 = scalar_lea.sflag [#allocation4], %s297
        %s299 = sand.u32 %s118, 1
        %s300 = smul.addr %s299, 256
        %s301 = scalar_lea.vmem [#allocation8], %s300
        // Predicated region
        $region49: #{tpu_custom_call.1} parent=39 // pred_check
          %p302 = pneg %p131
        $region50: #{tpu_custom_call.1} parent=39 // pred_check_branch
          %304 = sbr.rel (%p302) target = $region52
        $region51: #{tpu_custom_call.1} parent=39 // pred_region
          %306 = dma.done %s298, 4096
        $region52: #{tpu_custom_call.1} parent=39 // pred_fallthru
          _
        %s307 = sand.u32 %s21, 1
        %s308 = scalar_lea.sflag [#allocation4], %s307
        %s309 = sand.u32 %s144, 1
        %s310 = smul.addr %s309, 2
        %s311 = scalar_lea.vmem [#allocation9], %s310
        // Predicated region
        $region53: #{tpu_custom_call.1} parent=39 // pred_check
          %p312 = pneg %p157
        $region54: #{tpu_custom_call.1} parent=39 // pred_check_branch
          %314 = sbr.rel (%p312) target = $region56
        $region55: #{tpu_custom_call.1} parent=39 // pred_region
          %316 = dma.done %s308, 32
        $region56: #{tpu_custom_call.1} parent=39 // pred_fallthru
          _
        %p317 = pneg %p63
        %p318 = pneg %p60
        %p319 = pneg %p84
        %p320 = pneg %p81
        %p321 = pneg %p105
        %p322 = pneg %p102
        %s323 = sand.u32 %s21, 1
        %s324 = scalar_lea.sflag [#allocation4], %s323
        %s325 = sand.u32 %s118, 1
        %s326 = smul.addr %s325, 256
        %s327 = scalar_lea.vmem [#allocation8], %s326
        %p328 = pneg %p131
        %p329 = pneg %p128
        %s330 = sand.u32 %s21, 1
        %s331 = scalar_lea.sflag [#allocation4], %s330
        %s332 = sand.u32 %s144, 1
        %s333 = smul.addr %s332, 2
        %s334 = scalar_lea.vmem [#allocation9], %s333
        %p335 = pneg %p157
        %p336 = pneg %p154
        %p337 = pneg %p185
        %p338 = pneg %p182
        %s339 = sand.u32 %s172, 1
        %s340 = scalar_lea.sflag [#allocation5], %s339
        %s341 = sand.u32 %s172, 1
        %s342 = smul.addr %s341, 4
        %s343 = scalar_lea.vmem [#allocation10], %s342
        %s344 = smul.u32 2, %s26
        %s345 = smul.u32 2, %s27
        %s346 = smul.u32 2, %s27
        %s347 = smul.u32 2, %s27
        %p348 = scmp.eq.s32.totalorder %s28, 0
        // Predicated region
        $region57: #{tpu_custom_call.1} parent=39 // pred_check
          %p349 = pneg %p348
        $region58: #{tpu_custom_call.1} parent=39 // pred_check_branch
          %351 = sbr.rel (%p349) target = $region60
        $region59: #{tpu_custom_call.1} parent=39 // pred_region
          %352 = vst [vmem:[#allocation2] sm:$0x3] 0.0
        $region60: #{tpu_custom_call.1} parent=39 // pred_fallthru
          _
        %v353 = vld [vmem:[#allocation3] sm:$0xff]
        %v354 = vld [vmem:[#allocation3 + $0x8] sm:$0xff]
        %v355 = vld [vmem:[#allocation6] sm:$0xff]
        %v356 = vld [vmem:[#allocation6 + $0x8] sm:$0xff]
        %v357 = vld [vmem:[#allocation6 + $0x10] sm:$0xff]
        %v358 = vld [vmem:[#allocation6 + $0x18] sm:$0xff]
        %v359 = vld [vmem:[#allocation6 + $0x20] sm:$0xff]
        %v360 = vld [vmem:[#allocation6 + $0x28] sm:$0xff]
        %v361 = vld [vmem:[#allocation6 + $0x30] sm:$0xff]
        %v362 = vld [vmem:[#allocation6 + $0x38] sm:$0xff]
        %v363 = vld [vmem:[#allocation6 + $0x40] sm:$0xff]
        %v364 = vld [vmem:[#allocation6 + $0x48] sm:$0xff]
        %v365 = vld [vmem:[#allocation6 + $0x50] sm:$0xff]
        %v366 = vld [vmem:[#allocation6 + $0x58] sm:$0xff]
        %v367 = vld [vmem:[#allocation6 + $0x60] sm:$0xff]
        %v368 = vld [vmem:[#allocation6 + $0x68] sm:$0xff]
        %v369 = vld [vmem:[#allocation6 + $0x70] sm:$0xff]
        %v370 = vld [vmem:[#allocation6 + $0x78] sm:$0xff]
        %v371 = vld [vmem:[%s2] sm:$0x1]
        %v373 = vperm.slane %v371, 0
        %375 = vmatpush.msra.mxu0 %v370
        %376 = vmatpush.msra.mxu0 %v369
        %377 = vmatpush.msra.mxu0 %v368
        %378 = vmatpush.msra.mxu0 %v367
        %379 = vmatpush.msra.mxu0 %v366
        %380 = vmatpush.msra.mxu0 %v365
        %381 = vmatpush.msra.mxu0 %v364
        %382 = vmatpush.msra.mxu0 %v363
        %383 = vmatpush.msra.mxu0 %v362
        %384 = vmatpush.msra.mxu0 %v361
        %385 = vmatpush.msra.mxu0 %v360
        %386 = vmatpush.msra.mxu0 %v359
        %387 = vmatpush.msra.mxu0 %v358
        %388 = vmatpush.msra.mxu0 %v357
        %389 = vmatpush.msra.mxu0 %v356
        %390 = vmatpush.msra.mxu0 %v355
        %391 = vmatmul.f32.gmra.mxu0 %v353
        %v392 = vpop.f32.mrf.mxu0
        %v393 = vadd.f32 %v373, %v392
        %394 = vmatmul.f32.gmra.mxu0 %v354
        %v395 = vpop.f32.mrf.mxu0
        %v396 = vadd.f32 %v373, %v395
        %397 = vdwg.mxu0
        %v398 = vmax.f32 %v393, 0.0
        %v399 = vmax.f32 %v396, 0.0
        %v400 = vld [vmem:[#allocation2] sm:$0x3]
        %v401 = vrot.slane %v398, 4
        %v402 = vadd.f32 %v398, %v401
        %v403 = vrot.slane %v402, 2
        %v404 = vadd.f32 %v402, %v403
        %v405 = vrot.slane %v404, 1
        %v406 = vadd.f32 %v404, %v405
        %v407 = vrot.slane %v399, 4
        %v408 = vadd.f32 %v399, %v407
        %v409 = vrot.slane %v408, 2
        %v410 = vadd.f32 %v408, %v409
        %v411 = vrot.slane %v410, 1
        %v412 = vadd.f32 %v410, %v411
        %vm415 = vcmask 1041409
        %v416 = vsel %vm415, %v412, %v406
        %v418 = vadd.f32 %v400, %v416
        %419 = vst [vmem:[#allocation2] sm:$0x3] %v418
        // Predicated region
        $region61: #{tpu_custom_call.1} parent=39 // pred_check
          %p420 = pneg %p348
        $region62: #{tpu_custom_call.1} parent=39 // pred_check_branch
          %422 = sbr.rel (%p420) target = $region64
        $region63: #{tpu_custom_call.1} parent=39 // pred_region
          %v423 = vld [vmem:[#allocation2] sm:$0x3]
          %v424 = vmul.f32 %v423, 0.125
          %v425 = vld [vmem:[%s301] sm:$0xff]
          %v426 = vld [vmem:[%s301 + $0x8] sm:$0xff]
          %v427 = vld [vmem:[%s301 + $0x10] sm:$0xff]
          %v428 = vld [vmem:[%s301 + $0x18] sm:$0xff]
          %v429 = vld [vmem:[%s301 + $0x20] sm:$0xff]
          %v430 = vld [vmem:[%s301 + $0x28] sm:$0xff]
          %v431 = vld [vmem:[%s301 + $0x30] sm:$0xff]
          %v432 = vld [vmem:[%s301 + $0x38] sm:$0xff]
          %v433 = vld [vmem:[%s301 + $0x40] sm:$0xff]
          %v434 = vld [vmem:[%s301 + $0x48] sm:$0xff]
          %v435 = vld [vmem:[%s301 + $0x50] sm:$0xff]
          %v436 = vld [vmem:[%s301 + $0x58] sm:$0xff]
          %v437 = vld [vmem:[%s301 + $0x60] sm:$0xff]
          %v438 = vld [vmem:[%s301 + $0x68] sm:$0xff]
          %v439 = vld [vmem:[%s301 + $0x70] sm:$0xff]
          %v440 = vld [vmem:[%s301 + $0x78] sm:$0xff]
          %v441 = vld [vmem:[%s301 + $0x80] sm:$0xff]
          %v442 = vld [vmem:[%s301 + $0x88] sm:$0xff]
          %v443 = vld [vmem:[%s301 + $0x90] sm:$0xff]
          %v444 = vld [vmem:[%s301 + $0x98] sm:$0xff]
          %v445 = vld [vmem:[%s301 + $0xa0] sm:$0xff]
          %v446 = vld [vmem:[%s301 + $0xa8] sm:$0xff]
          %v447 = vld [vmem:[%s301 + $0xb0] sm:$0xff]
          %v448 = vld [vmem:[%s301 + $0xb8] sm:$0xff]
          %v449 = vld [vmem:[%s301 + $0xc0] sm:$0xff]
          %v450 = vld [vmem:[%s301 + $0xc8] sm:$0xff]
          %v451 = vld [vmem:[%s301 + $0xd0] sm:$0xff]
          %v452 = vld [vmem:[%s301 + $0xd8] sm:$0xff]
          %v453 = vld [vmem:[%s301 + $0xe0] sm:$0xff]
          %v454 = vld [vmem:[%s301 + $0xe8] sm:$0xff]
          %v455 = vld [vmem:[%s301 + $0xf0] sm:$0xff]
          %v456 = vld [vmem:[%s301 + $0xf8] sm:$0xff]
          %v457 = vld [vmem:[%s311] sm:$0x3]
          %v459 = vperm.slane %v457, 0
          %v460 = vperm.slane %v457, 1
          %463 = vmatpush.msra.mxu0 %v455
          %464 = vmatpush.msra.mxu0 %v453
          %465 = vmatpush.msra.mxu0 %v451
          %466 = vmatpush.msra.mxu0 %v449
          %467 = vmatpush.msra.mxu0 %v447
          %468 = vmatpush.msra.mxu0 %v445
          %469 = vmatpush.msra.mxu0 %v443
          %470 = vmatpush.msra.mxu0 %v441
          %471 = vmatpush.msra.mxu0 %v439
          %472 = vmatpush.msra.mxu0 %v437
          %473 = vmatpush.msra.mxu0 %v435
          %474 = vmatpush.msra.mxu0 %v433
          %475 = vmatpush.msra.mxu0 %v431
          %476 = vmatpush.msra.mxu0 %v429
          %477 = vmatpush.msra.mxu0 %v427
          %478 = vmatpush.msra.mxu0 %v425
          %479 = vmatmul.f32.gmra.mxu0 %v424
          %v480 = vpop.f32.mrf.mxu0
          %v481 = vadd.f32 %v459, %v480
          %482 = vdwg.mxu0
          %483 = vmatpush.msra.mxu0 %v456
          %484 = vmatpush.msra.mxu0 %v454
          %485 = vmatpush.msra.mxu0 %v452
          %486 = vmatpush.msra.mxu0 %v450
          %487 = vmatpush.msra.mxu0 %v448
          %488 = vmatpush.msra.mxu0 %v446
          %489 = vmatpush.msra.mxu0 %v444
          %490 = vmatpush.msra.mxu0 %v442
          %491 = vmatpush.msra.mxu0 %v440
          %492 = vmatpush.msra.mxu0 %v438
          %493 = vmatpush.msra.mxu0 %v436
          %494 = vmatpush.msra.mxu0 %v434
          %495 = vmatpush.msra.mxu0 %v432
          %496 = vmatpush.msra.mxu0 %v430
          %497 = vmatpush.msra.mxu0 %v428
          %498 = vmatpush.msra.mxu0 %v426
          %499 = vmatmul.f32.gmra.mxu0 %v424
          %v500 = vpop.f32.mrf.mxu0
          %v501 = vadd.f32 %v460, %v500
          %502 = vdwg.mxu0
          %v505 = vrot.slane %v501, 6
          %vm506 = vcmask 1041408
          %v507 = vsel %vm506, %v481, %v505
          %509 = vst [vmem:[%s343] sm:$0xf] %v507
        $region64: #{tpu_custom_call.1} parent=39 // pred_fallthru
          _
        %s510 = sand.u32 %s172, 1
        %s511 = scalar_lea.sflag [#allocation5], %s510
        %s512 = sand.u32 %s172, 1
        %s513 = smul.addr %s512, 4
        %s514 = scalar_lea.vmem [#allocation10], %s513
        // Predicated region
        $region65: #{tpu_custom_call.1} parent=39 // pred_check
          %p515 = pneg %p182
        $region66: #{tpu_custom_call.1} parent=39 // pred_check_branch
          %517 = sbr.rel (%p515) target = $region68
        $region67: #{tpu_custom_call.1} parent=39 // pred_region
          %s518 = smul.u32 2, %s27
          %520 = vsyncadd %s511, 0
          %s521 = smul.addr %s26, 4
          %s522 = sadd.s32 %s518, %s521
          %s523 = smul.addr %s522, 2
          %s524 = scalar_lea.hbm %s5, %s523
          %s526 = sshll.u32 %s514, 4
          %s527 = int_to_ptr.vmem [resolvable:$true] %s526
          %s528 = sshll.u32 %s524, 4
          %s529 = int_to_ptr.hbm [resolvable:$true] %s528
          %531 = dma.vmem_to_hbm [thread:$0]  %s527, 64, %s529, %s511
        $region68: #{tpu_custom_call.1} parent=39 // pred_fallthru
          _
      $region40: #{tpu_custom_call.1} parent=5 // pred_fallthru
        _
      %p532 = scmp.le.s32.totalorder 2, %s16
      // Predicated region
      $region69: #{tpu_custom_call.1} parent=5 // pred_check
        %p533 = pneg %p532
      $region70: #{tpu_custom_call.1} parent=5 // pred_check_branch
        %535 = sbr.rel (%p533) target = $region72
      $region71: #{tpu_custom_call.1} parent=5 // pred_region
        %s536 = ssub.s32 %s16, 2
        // Predicated region
        $region73: #{tpu_custom_call.1} parent=71 // pred_check
          %p537 = pneg %p188
        $region74: #{tpu_custom_call.1} parent=71 // pred_check_branch
          %539 = sbr.rel (%p537) target = $region76
        $region75: #{tpu_custom_call.1} parent=71 // pred_region
          %s540 = sand.u32 %s173, 1
          %s541 = scalar_lea.sflag [#allocation5], %s540
          %s542 = sand.u32 %s173, 1
          %s543 = smul.addr %s542, 4
          %s544 = scalar_lea.vmem [#allocation10], %s543
          %546 = dma.done %s541, 64
        $region76: #{tpu_custom_call.1} parent=71 // pred_fallthru
          _
      $region72: #{tpu_custom_call.1} parent=5 // pred_fallthru
        _
    $region6: #{tpu_custom_call.1} parent=1 // loop_footer
      %s20 = sadd.s32 1, %s16
    $region7: #{tpu_custom_call.1} parent=1 // loop_footer_branch
      %15 = sbr.rel target = $region3
    $region8: #{tpu_custom_call.1} parent=1 // loop_exit
      _
    %547 = vsyncpa [#allocation4], 1
    %s548 = scalar_lea.sflag [#allocation4], 1
    %549 = vsyncpa %s548, 1
    %550 = vsyncpa [#allocation7], 1
    %551 = vsyncpa [#allocation5], 1
    %s552 = scalar_lea.sflag [#allocation5], 1
    %553 = vsyncpa %s552, 1

</llo_original>
